<compile_context>
chip_gen: v7x
topology: tpu7x:2x2x1
jax: 0.10.0
libtpu: 0.0.40
codegen_flags: <defaults>
</compile_context>

<pallas_src>
import numpy as np
import jax
import jax.numpy as jnp
from jax.experimental import pallas as pl
from jax.experimental.pallas import tpu as pltpu


def _round_up(x, m):
    return (x + m - 1) // m * m


def _pick_h_tile(H, target):
    """Largest multiple of 8 that divides H and is <= target; else full H."""
    t = min(H, target)
    while t >= 8:
        if H % t == 0 and t % 8 == 0:
            return t
        t -= 1
    return H


# --------------------------------------------------------------------------
# Kernel 1: pixel normalization  (x - pixel_mean[c]) * (1 / pixel_std[c])
# one grid step per (image, H-tile); block (1, C, TH, W)
# --------------------------------------------------------------------------
def _norm_kernel(mean_ref, inv_std_ref, x_ref, o_ref):
    C = x_ref.shape[1]
    for c in range(C):  # static, tiny channel count -> unrolled
        o_ref[0, c] = (x_ref[0, c].astype(jnp.float32) - mean_ref[c]) * inv_std_ref[c]


def normalize_images(images, pixel_mean, pixel_std, *, tile_h=None):
    """(x - pixel_mean[c]) / pixel_std[c] on NCHW images (any input dtype)."""
    B, C, H, W = images.shape
    th = _pick_h_tile(H, H if tile_h is None else tile_h)
    inv_std = 1.0 / pixel_std.astype(jnp.float32)
    return pl.pallas_call(
        _norm_kernel,
        out_shape=jax.ShapeDtypeStruct((B, C, H, W), jnp.float32),
        grid=(B, H // th),
        in_specs=[
            pl.BlockSpec(memory_space=pltpu.MemorySpace.SMEM),   # pixel_mean (C,)
            pl.BlockSpec(memory_space=pltpu.MemorySpace.SMEM),   # 1/pixel_std (C,)
            pl.BlockSpec((1, C, th, W), lambda b, t: (b, 0, t, 0)),
        ],
        out_specs=pl.BlockSpec((1, C, th, W), lambda b, t: (b, 0, t, 0)),
        compiler_params=pltpu.CompilerParams(
            dimension_semantics=("parallel", "parallel")),
    )(pixel_mean.astype(jnp.float32), inv_std, images)


# --------------------------------------------------------------------------
# Kernel 2: fused bilinear upsample (align_corners=False) + semantic_inference
# per grid step (one image, one H-tile):
#   t1  = Wh_tile @ pred_masks            (TH, Qp, w)     [H-interp]
#   up  = t1 @ Ww^T                       (TH, Qp, W)     [W-interp]
#   sig = sigmoid(up)                     (TH, Qp, W)     [EUP exp + approx rcp]
#   out = mask_cls^T contracted over Qp   (K, TH, W)      [no transpose needed]
# --------------------------------------------------------------------------
def _semantic_inference_kernel(cls_ref, mask_ref, wh_ref, ww_ref, out_ref):
    clsT = cls_ref[0].astype(jnp.float32)                # (K, Qp)  softmax probs^T
    m = mask_ref[0].astype(jnp.float32)                  # (Qp, h, w)
    wh = wh_ref[...].astype(jnp.float32)                 # (TH, h)
    ww = ww_ref[...].astype(jnp.float32)                 # (W, w)

    # H-interp first: (TH,h) . (Qp,h,w) -> (TH, Qp, w); keeps (TH, Q, *) layout
    t1 = jax.lax.dot_general(wh, m, (((1,), (1,)), ((), ())),
                             preferred_element_type=jnp.float32)
    # W-interp: (TH,Qp,w) . (W,w) -> (TH, Qp, W)
    up = jax.lax.dot_general(t1, ww, (((2,), (1,)), ((), ())),
                             preferred_element_type=jnp.float32)

    # sigmoid via EUP exp + EUP approximate reciprocal (frees VALU slots);
    # exp overflow for very negative logits -> inf -> rcp -> 0 (still correct).
    mask_pred = pl.reciprocal(1.0 + jnp.exp(-up), approx=True)   # (TH, Qp, W)

    # einsum('qc,qhw->chw') restricted to this tile: contract the (padded)
    # query axis directly from axis 1 of (TH, Qp, W) -> (K, TH, W), which is
    # already the output layout (W lane-dense), so no transpose is emitted.
    sem = jax.lax.dot_general(clsT, mask_pred, (((1,), (1,)), ((), ())),
                              preferred_element_type=jnp.float32)
    out_ref[0] = sem


def _bilinear_matrix(out_size, in_size):
    # PyTorch F.interpolate(mode='bilinear', align_corners=False) as a matrix.
    scale = in_size / out_size
    i = np.arange(out_size, dtype=np.float64)
    x = (i + 0.5) * scale - 0.5
    x = np.clip(x, 0.0, in_size - 1)
    x0 = np.floor(x).astype(np.int64)
    x1 = np.minimum(x0 + 1, in_size - 1)
    w1 = x - x0
    w0 = 1.0 - w1
    M = np.zeros((out_size, in_size), np.float32)
    M[np.arange(out_size), x0] += w0.astype(np.float32)
    M[np.arange(out_size), x1] += w1.astype(np.float32)
    return M


def semantic_inference(pred_logits, pred_masks, out_hw, *, tile_h=None,
                       q_pad_multiple=128, operand_dtype=jnp.float32):
    """softmax(pred_logits)[..., :-1] . sigmoid(bilinear_up(pred_masks)) over Q.

    pred_logits: (B, Q, K+1), pred_masks: (B, Q, h, w) -> (B, K, H, W) f32."""
    B, Q, K1 = pred_logits.shape
    _, _, h, w = pred_masks.shape
    H, W = out_hw
    K = K1 - 1

    # Tiny (Q,K+1) softmax + no-object slice hoisted out of the hot kernel.
    mask_cls = jax.nn.softmax(pred_logits.astype(jnp.float32), axis=-1)[..., :-1]

    # Pad Q to the MXU contraction width. Zero class rows contribute exactly 0
    # to the output regardless of the sigmoid of the padded mask rows -> exact.
    Qp = _round_up(Q, q_pad_multiple)
    if Qp != Q:
        mask_cls = jnp.pad(mask_cls, ((0, 0), (0, Qp - Q), (0, 0)))
        pred_masks = jnp.pad(pred_masks, ((0, 0), (0, Qp - Q), (0, 0), (0, 0)))
    # Pre-transpose the tiny class tensor so the kernel contracts Q with a
    # plain (K,Qp).(TH,Qp,W) dot_general (no in-kernel transpose).
    mask_cls_t = jnp.swapaxes(mask_cls, 1, 2).astype(operand_dtype)   # (B, K, Qp)
    pred_masks = pred_masks.astype(operand_dtype)
    Wh = jnp.asarray(_bilinear_matrix(H, h), dtype=operand_dtype)     # (H, h)
    Ww = jnp.asarray(_bilinear_matrix(W, w), dtype=operand_dtype)     # (W, w)

    th = _pick_h_tile(H, H if tile_h is None else tile_h)

    return pl.pallas_call(
        _semantic_inference_kernel,
        out_shape=jax.ShapeDtypeStruct((B, K, H, W), jnp.float32),
        grid=(B, H // th),
        in_specs=[
            pl.BlockSpec((1, K, Qp), lambda b, t: (b, 0, 0)),
            pl.BlockSpec((1, Qp, h, w), lambda b, t: (b, 0, 0, 0)),
            pl.BlockSpec((th, h), lambda b, t: (t, 0)),
            pl.BlockSpec((W, w), lambda b, t: (0, 0)),
        ],
        out_specs=pl.BlockSpec((1, K, th, W), lambda b, t: (b, 0, t, 0)),
        compiler_params=pltpu.CompilerParams(
            # Both axes independent -> megacore / v7x 2nd TC can shard the
            # H-tile axis even when B == 1.
            dimension_semantics=("parallel", "parallel"),
            # 32 MiB scoped VMEM is safe on every generation (v7x physical is
            # 64 MiB); at production shapes derive tile_h against this budget
            # (roughly halve a v6e-derived tile for v7x).
            vmem_limit_bytes=32 * 1024 * 1024,
        ),
    )(mask_cls_t, pred_masks, Wh, Ww)


# --------------------------------------------------------------------------
# Pure-JAX references for correctness checking
# --------------------------------------------------------------------------
def _ref_normalize(images, pixel_mean, pixel_std):
    return (images - pixel_mean[None, :, None, None]) / pixel_std[None, :, None, None]


def _ref_semseg(pred_logits, pred_masks, Wh, Ww):
    up = jnp.einsum('Hh,bqhw,Ww->bqHW', Wh, pred_masks, Ww)
    mask_pred = jax.nn.sigmoid(up)
    mask_cls = jax.nn.softmax(pred_logits, axis=-1)[..., :-1]
    return jnp.einsum('bqc,bqhw->bchw', mask_cls, mask_pred)


if __name__ == "__main__":
    key = jax.random.PRNGKey(0)
    B, Cin, H, W = 2, 3, 32, 32          # batch, image channels, image size
    Q, K = 8, 5                          # num_queries, num_classes (+1 "no object")
    h, w = 8, 8                          # mask-head resolution (1/4 of image)

    k1, k2, k3 = jax.random.split(key, 3)
    images = jax.random.uniform(k1, (B, Cin, H, W), jnp.float32) * 255.0
    pixel_mean = jnp.array([123.675, 116.28, 103.53], jnp.float32)
    pixel_std = jnp.array([58.395, 57.12, 57.375], jnp.float32)

    # 1) normalization (Pallas kernel), tiled over H to exercise the pipeline
    norm = normalize_images(images, pixel_mean, pixel_std, tile_h=16)

    # 2) backbone + sem_seg_head
    # TODO(synk): backbone and sem_seg_head are external registry-built modules
    # (ResNet/Swin + MaskFormer transformer head); stubbed with deterministic
    # linear heads so the Pallas-covered pre/post-processing can be exercised.
    w_cls = jax.random.normal(k2, (Q, Cin, K + 1), jnp.float32) * 0.1
    w_mask = jax.random.normal(k3, (Q, Cin), jnp.float32) * 0.1
    feat = norm.reshape(B, Cin, h, H // h, w, W // w).mean(axis=(3, 5))     # (B,Cin,h,w)
    pred_masks = jnp.einsum('qc,bchw->bqhw', w_mask, feat)                  # (B,Q,h,w)
    pred_logits = jnp.einsum('bc,qck->bqk', feat.mean(axis=(2, 3)), w_cls)  # (B,Q,K+1)

    # 3) + 4) fused bilinear upsample + semantic_inference (Pallas kernel)
    sem_seg = semantic_inference(pred_logits, pred_masks, (H, W), tile_h=16)
    jax.block_until_ready(sem_seg)

    # correctness checks against pure-JAX references
    ref_norm = _ref_normalize(images, pixel_mean, pixel_std)
    np.testing.assert_allclose(np.asarray(norm), np.asarray(ref_norm),
                               rtol=1e-5, atol=1e-5)

    Wh = jnp.asarray(_bilinear_matrix(H, h))
    Ww = jnp.asarray(_bilinear_matrix(W, w))
    ref_sem = _ref_semseg(pred_logits, pred_masks, Wh, Ww)
    # loose tolerance accounts for the EUP approximate reciprocal in sigmoid
    np.testing.assert_allclose(np.asarray(sem_seg), np.asarray(ref_sem),
                               rtol=2e-2, atol=2e-3)

    print("KERNEL_OK")
</pallas_src>

<mosaic_0001>
module attributes {stable_mosaic.version = 11 : i64} {
  func.func @_norm_kernel(%arg0: i32, %arg1: i32, %arg2: memref<3xf32, #tpu.memory_space<smem>>, %arg3: memref<3xf32, #tpu.memory_space<smem>>, %arg4: memref<1x3x16x32xf32, #tpu.memory_space<vmem>>, %arg5: memref<1x3x16x32xf32, #tpu.memory_space<vmem>>) attributes {dimension_semantics = [#tpu.dimension_semantics<parallel>, #tpu.dimension_semantics<parallel>], iteration_bounds = array<i64: 2, 2>, scalar_prefetch = 0 : i64, scratch_operands = 0 : i64, tpu.core_type = #tpu.core_type<tc>, window_params = [{transform_indices = @transform_0, window_bounds = array<i64: 3>}, {transform_indices = @transform_1, window_bounds = array<i64: 3>}, {transform_indices = @transform_2, window_bounds = array<i64: 1, 3, 16, 32>}, {transform_indices = @transform_3, window_bounds = array<i64: 1, 3, 16, 32>}]} {
    %c0 = arith.constant 0 : index
    %c0_0 = arith.constant 0 : index
    %c0_1 = arith.constant 0 : index
    %c0_2 = arith.constant 0 : index
    %0 = vector.load %arg4[%c0, %c0_0, %c0_1, %c0_2] : memref<1x3x16x32xf32, #tpu.memory_space<vmem>>, vector<1x1x16x32xf32>
    %1 = vector.shape_cast %0 : vector<1x1x16x32xf32> to vector<16x32xf32>
    %c0_3 = arith.constant 0 : index
    %2 = memref.load %arg2[%c0_3] : memref<3xf32, #tpu.memory_space<smem>>
    %3 = vector.broadcast %2 : f32 to vector<16x32xf32>
    %4 = arith.subf %1, %3 : vector<16x32xf32>
    %c0_4 = arith.constant 0 : index
    %5 = memref.load %arg3[%c0_4] : memref<3xf32, #tpu.memory_space<smem>>
    %6 = vector.broadcast %5 : f32 to vector<16x32xf32>
    %7 = arith.mulf %4, %6 : vector<16x32xf32>
    %c0_5 = arith.constant 0 : index
    %c0_6 = arith.constant 0 : index
    %c0_7 = arith.constant 0 : index
    %c0_8 = arith.constant 0 : index
    %8 = vector.load %arg5[%c0_5, %c0_6, %c0_7, %c0_8] : memref<1x3x16x32xf32, #tpu.memory_space<vmem>>, vector<1x1x16x32xf32>
    %9 = vector.shape_cast %8 : vector<1x1x16x32xf32> to vector<16x32xf32>
    %10 = vector.shape_cast %7 : vector<16x32xf32> to vector<1x1x16x32xf32>
    tpu.vector_store %arg5[%c0_5, %c0_6, %c0_7, %c0_8], %10 {strides = array<i32>} : memref<1x3x16x32xf32, #tpu.memory_space<vmem>>, vector<1x1x16x32xf32>,
    %c0_9 = arith.constant 0 : index
    %c1 = arith.constant 1 : index
    %c0_10 = arith.constant 0 : index
    %c0_11 = arith.constant 0 : index
    %11 = vector.load %arg4[%c0_9, %c1, %c0_10, %c0_11] : memref<1x3x16x32xf32, #tpu.memory_space<vmem>>, vector<1x1x16x32xf32>
    %12 = vector.shape_cast %11 : vector<1x1x16x32xf32> to vector<16x32xf32>
    %c1_12 = arith.constant 1 : index
    %13 = memref.load %arg2[%c1_12] : memref<3xf32, #tpu.memory_space<smem>>
    %14 = vector.broadcast %13 : f32 to vector<16x32xf32>
    %15 = arith.subf %12, %14 : vector<16x32xf32>
    %c1_13 = arith.constant 1 : index
    %16 = memref.load %arg3[%c1_13] : memref<3xf32, #tpu.memory_space<smem>>
    %17 = vector.broadcast %16 : f32 to vector<16x32xf32>
    %18 = arith.mulf %15, %17 : vector<16x32xf32>
    %c0_14 = arith.constant 0 : index
    %c1_15 = arith.constant 1 : index
    %c0_16 = arith.constant 0 : index
    %c0_17 = arith.constant 0 : index
    %19 = vector.load %arg5[%c0_14, %c1_15, %c0_16, %c0_17] : memref<1x3x16x32xf32, #tpu.memory_space<vmem>>, vector<1x1x16x32xf32>
    %20 = vector.shape_cast %19 : vector<1x1x16x32xf32> to vector<16x32xf32>
    %21 = vector.shape_cast %18 : vector<16x32xf32> to vector<1x1x16x32xf32>
    tpu.vector_store %arg5[%c0_14, %c1_15, %c0_16, %c0_17], %21 {strides = array<i32>} : memref<1x3x16x32xf32, #tpu.memory_space<vmem>>, vector<1x1x16x32xf32>,
    %c0_18 = arith.constant 0 : index
    %c2 = arith.constant 2 : index
    %c0_19 = arith.constant 0 : index
    %c0_20 = arith.constant 0 : index
    %22 = vector.load %arg4[%c0_18, %c2, %c0_19, %c0_20] : memref<1x3x16x32xf32, #tpu.memory_space<vmem>>, vector<1x1x16x32xf32>
    %23 = vector.shape_cast %22 : vector<1x1x16x32xf32> to vector<16x32xf32>
    %c2_21 = arith.constant 2 : index
    %24 = memref.load %arg2[%c2_21] : memref<3xf32, #tpu.memory_space<smem>>
    %25 = vector.broadcast %24 : f32 to vector<16x32xf32>
    %26 = arith.subf %23, %25 : vector<16x32xf32>
    %c2_22 = arith.constant 2 : index
    %27 = memref.load %arg3[%c2_22] : memref<3xf32, #tpu.memory_space<smem>>
    %28 = vector.broadcast %27 : f32 to vector<16x32xf32>
    %29 = arith.mulf %26, %28 : vector<16x32xf32>
    %c0_23 = arith.constant 0 : index
    %c2_24 = arith.constant 2 : index
    %c0_25 = arith.constant 0 : index
    %c0_26 = arith.constant 0 : index
    %30 = vector.load %arg5[%c0_23, %c2_24, %c0_25, %c0_26] : memref<1x3x16x32xf32, #tpu.memory_space<vmem>>, vector<1x1x16x32xf32>
    %31 = vector.shape_cast %30 : vector<1x1x16x32xf32> to vector<16x32xf32>
    %32 = vector.shape_cast %29 : vector<16x32xf32> to vector<1x1x16x32xf32>
    tpu.vector_store %arg5[%c0_23, %c2_24, %c0_25, %c0_26], %32 {strides = array<i32>} : memref<1x3x16x32xf32, #tpu.memory_space<vmem>>, vector<1x1x16x32xf32>,
    return
  }
  func.func @transform_0(%arg0: i32, %arg1: i32) -> i32 {
    %c0_i32 = arith.constant 0 : i32
    %c0_i32_0 = arith.constant 0 : i32
    return %c0_i32 : i32
  }
  func.func @transform_1(%arg0: i32, %arg1: i32) -> i32 {
    %c0_i32 = arith.constant 0 : i32
    %c0_i32_0 = arith.constant 0 : i32
    return %c0_i32 : i32
  }
  func.func @transform_2(%arg0: i32, %arg1: i32) -> (i32, i32, i32, i32) {
    %c0_i32 = arith.constant 0 : i32
    %c0_i32_0 = arith.constant 0 : i32
    %c0_i32_1 = arith.constant 0 : i32
    return %arg0, %c0_i32, %arg1, %c0_i32_0 : i32, i32, i32, i32
  }
  func.func @transform_3(%arg0: i32, %arg1: i32) -> (i32, i32, i32, i32) {
    %c0_i32 = arith.constant 0 : i32
    %c0_i32_0 = arith.constant 0 : i32
    %c0_i32_1 = arith.constant 0 : i32
    return %arg0, %c0_i32, %arg1, %c0_i32_0 : i32, i32, i32, i32
  }
}

</mosaic_0001>

<llo_original>
// kernel: tpu_custom_call.1
$region0: #{tpu_custom_call.1}
  #allocation0 [shape = 'u32[]', space=smem, size = 0x4, offset = 0x4, fixed_abs, tag = 'smem constant byte address 0x4 - core index']
  #allocation1 [shape = 'u32[144,128]{1,0:T(1,128)}', space=vmem, size = 0x12000, scoped, tag = 'internal scratch']
  #allocation10 [shape = 's32[]', space=sflag, size = 0x4, offset = 0, fixed_abs, tag = 'sflag constant byte address 0x0 - dummy sync flag']
  #allocation12 [shape = 's32[]', space=sflag, size = 0x4, offset = 0, fixed_abs, tag = 'sflag constant byte address 0x0 - dummy sync flag']
  %s0 = inlined_call_operand.hbm [shape: f32[3], index: 0, kind: input, shape index: {}]
  %s1 = inlined_call_operand.vmem [shape: f32[3], index: 1, kind: input, shape index: {}]
  %s2 = inlined_call_operand.hbm [shape: f32[2,3,32,32], index: 2, kind: input, shape index: {}]
  %s3 = inlined_call_operand.hbm [shape: f32[2,3,32,32], index: 3, kind: output, shape index: {}]
  %s4 = sld [smem:[#allocation0]]
  $region57: #{tpu_custom_call.1} parent=0
    _
  %s6 = ssub.s32 1, %s4
  %s7 = scalar_select 0, %s6, %s4
  $region1: #{tpu_custom_call.1} parent=0
    #allocation2 [shape = 'u8[512]{0}', space=smem, size = 0x200, scoped, tag = 'input window, operand 0, single buffered']
    #allocation3 [shape = 's32[2]{0}', space=sflag, size = 0x8, scoped, tag = 'scoped memory for tpu_custom_call.1']
    #allocation4 [shape = 's32[2]{0}', space=sflag, size = 0x8, scoped, tag = 'scoped memory for tpu_custom_call.1']
    #allocation5 [shape = 's32[2]{0}', space=sflag, size = 0x8, scoped, tag = 'scoped memory for tpu_custom_call.1']
    #allocation6 [shape = 's32[2]{0}', space=sflag, size = 0x8, scoped, tag = 'scoped memory for tpu_custom_call.1']
    #allocation7 [shape = 'u8[512]{0}', space=smem, size = 0x200, scoped, tag = 'input window, operand 1, single buffered']
    #allocation8 [shape = 'u8[49152]{0}', space=vmem, size = 0xc000, scoped, tag = 'input window, operand 2']
    #allocation9 [shape = 'u8[49152]{0}', space=vmem, size = 0xc000, scoped, tag = 'output window, operand 0']
    %8 = vsyncpa [#allocation5], 0
    %9 = vsyncpa [#allocation6], 0
    %10 = vsyncpa [#allocation3], 0
    %s11 = scalar_lea.sflag [#allocation3], 1
    %12 = vsyncpa %s11, 0
    %13 = vsyncpa [#allocation4], 0
    %s14 = scalar_lea.sflag [#allocation4], 1
    %15 = vsyncpa %s14, 0
    loop: start=0, step=1, limit=6
    $region2: #{tpu_custom_call.1} parent=1 // loop_pre_header
      _
    $region3: #{tpu_custom_call.1} parent=1 // loop_header
      %s17 = sphi 0, %s21
      %p18 = scmp.ge.s32.totalorder %s17, 6
      %s24 = sphi 0, %s36
      %s25 = sphi 0, %s32
      %s26 = sphi 0, %s24
      %s27 = sphi 0, %s25
      %s28 = sphi 0, %s26
      %s29 = sphi 0, %s27
      %s37 = sphi 0, %s37
      %s39 = sphi 0, %s37
      %s40 = sphi 0, %s39
      %s54 = sphi 0, %s40
      %s58 = sphi 0, %s58
      %s60 = sphi 0, %s58
      %s61 = sphi 0, %s60
      %s75 = sphi 0, %s61
      %s83 = sphi 0, %s85
      %s86 = sphi 0, %s83
      %s87 = sphi 0, %s86
      %s103 = sphi 0, %s87
      %s111 = sphi 0, %s113
      %s114 = sphi 0, %s111
      %s115 = sphi 0, %s114
      %s131 = sphi 0, %s115
    $region4: #{tpu_custom_call.1} parent=1 // loop_header_branch
      %20 = sbr.rel (%p18) target = $region8
    $region5: #{tpu_custom_call.1} parent=1 // loop_body
      %s22 = ssub.s32 %s17, 1
      %s23 = ssub.s32 %s17, 2
      %s30 = sadd.s32 1, %s25
      %p31 = scmp.ge.s32.totalorder %s30, 2
      %s32 = scalar_select %p31, 0, %s30
      %s33 = sadd.s32 1, %s24
      %s34 = scalar_select %p31, %s33, %s24
      %p35 = scmp.ge.s32.totalorder %s34, 2
      %s36 = scalar_select %p35, 0, %s34
      %s38 = sadd.s32 %s37, 1
      %p41 = scmp.eq.s32.totalorder %s17, 3
      %p42 = scmp.ne.s32.totalorder %s37, %s39
      %p43 = scmp.eq.s32.totalorder %s17, 0
      %p44 = por %p42, %p43
      %p45 = scmp.ne.s32.totalorder %s37, %s39
      %p46 = scmp.eq.s32.totalorder %s22, 3
      %p47 = por %p45, %p46
      %p48 = scmp.ne.s32.totalorder %s39, %s40
      %p49 = scmp.eq.s32.totalorder %s22, 0
      %p50 = por %p48, %p49
      %p51 = scmp.ne.s32.totalorder %s39, %s40
      %p52 = scmp.eq.s32.totalorder %s23, 3
      %p53 = por %p51, %p52
      %p55 = scmp.ne.s32.totalorder %s40, %s54
      %p56 = scmp.eq.s32.totalorder %s23, 0
      %p57 = por %p55, %p56
      %s59 = sadd.s32 %s58, 1
      %p62 = scmp.eq.s32.totalorder %s17, 3
      %p63 = scmp.ne.s32.totalorder %s58, %s60
      %p64 = scmp.eq.s32.totalorder %s17, 0
      %p65 = por %p63, %p64
      %p66 = scmp.ne.s32.totalorder %s58, %s60
      %p67 = scmp.eq.s32.totalorder %s22, 3
      %p68 = por %p66, %p67
      %p69 = scmp.ne.s32.totalorder %s60, %s61
      %p70 = scmp.eq.s32.totalorder %s22, 0
      %p71 = por %p69, %p70
      %p72 = scmp.ne.s32.totalorder %s60, %s61
      %p73 = scmp.eq.s32.totalorder %s23, 3
      %p74 = por %p72, %p73
      %p76 = scmp.ne.s32.totalorder %s61, %s75
      %p77 = scmp.eq.s32.totalorder %s23, 0
      %p78 = por %p76, %p77
      %s79 = ssub.s32 %s24, %s36
      %s80 = ssub.s32 %s25, %s32
      %s81 = sor.u32 %s79, %s80
      %p82 = scmp.eq.s32.totalorder %s81, 0
      %s84 = sadd.s32 %s83, 1
      %s85 = scalar_select %p82, %s83, %s84
      %p88 = pneg %p82
      %p89 = scmp.eq.s32.totalorder %s17, 3
      %p90 = por %p88, %p89
      %p91 = scmp.ne.s32.totalorder %s83, %s86
      %p92 = scmp.eq.s32.totalorder %s17, 0
      %p93 = por %p91, %p92
      %p94 = scmp.ne.s32.totalorder %s83, %s86
      %p95 = scmp.eq.s32.totalorder %s22, 3
      %p96 = por %p94, %p95
      %p97 = scmp.ne.s32.totalorder %s86, %s87
      %p98 = scmp.eq.s32.totalorder %s22, 0
      %p99 = por %p97, %p98
      %p100 = scmp.ne.s32.totalorder %s86, %s87
      %p101 = scmp.eq.s32.totalorder %s23, 3
      %p102 = por %p100, %p101
      %p104 = scmp.ne.s32.totalorder %s87, %s103
      %p105 = scmp.eq.s32.totalorder %s23, 0
      %p106 = por %p104, %p105
      %s107 = ssub.s32 %s24, %s36
      %s108 = ssub.s32 %s25, %s32
      %s109 = sor.u32 %s107, %s108
      %p110 = scmp.eq.s32.totalorder %s109, 0
      %s112 = sadd.s32 %s111, 1
      %s113 = scalar_select %p110, %s111, %s112
      %p116 = pneg %p110
      %p117 = scmp.eq.s32.totalorder %s17, 3
      %p118 = por %p116, %p117
      %p119 = scmp.ne.s32.totalorder %s111, %s114
      %p120 = scmp.eq.s32.totalorder %s17, 0
      %p121 = por %p119, %p120
      %p122 = scmp.ne.s32.totalorder %s111, %s114
      %p123 = scmp.eq.s32.totalorder %s22, 3
      %p124 = por %p122, %p123
      %p125 = scmp.ne.s32.totalorder %s114, %s115
      %p126 = scmp.eq.s32.totalorder %s22, 0
      %p127 = por %p125, %p126
      %p128 = scmp.ne.s32.totalorder %s114, %s115
      %p129 = scmp.eq.s32.totalorder %s23, 3
      %p130 = por %p128, %p129
      %p132 = scmp.ne.s32.totalorder %s115, %s131
      %p133 = scmp.eq.s32.totalorder %s23, 0
      %p134 = por %p132, %p133
      %p135 = scmp.le.s32.totalorder 1, %s17
      %p136 = scmp.lt.s32.totalorder %s17, 5
      %p137 = pnand %p135, %p136
      %p138 = pneg %p137
      // Predicated region
      $region9: #{tpu_custom_call.1} parent=5 // pred_check
        _
      $region10: #{tpu_custom_call.1} parent=5 // pred_check_branch
        %140 = sbr.rel (%p137) target = $region12
      $region11: #{tpu_custom_call.1} parent=5 // pred_region
        %s141 = ssub.s32 %s17, 1
        // Predicated region
        $region13: #{tpu_custom_call.1} parent=11 // pred_check
          %p142 = pneg %p50
        $region14: #{tpu_custom_call.1} parent=11 // pred_check_branch
          %144 = sbr.rel (%p142) target = $region16
        $region15: #{tpu_custom_call.1} parent=11 // pred_region
          %s146 = ssub.s32 16, 16
          %147 = vsyncadd [#allocation5], %s146
          %150 = dma.hbm_to_smem %s0, 16, [#allocation2], [#allocation5]
        $region16: #{tpu_custom_call.1} parent=11 // pred_fallthru
          _
        // Predicated region
        $region17: #{tpu_custom_call.1} parent=11 // pred_check
          %p151 = pneg %p71
        $region18: #{tpu_custom_call.1} parent=11 // pred_check_branch
          %153 = sbr.rel (%p151) target = $region20
        $region19: #{tpu_custom_call.1} parent=11 // pred_region
          %s155 = ssub.s32 16, 16
          %156 = vsyncadd [#allocation6], %s155
          %s158 = sshll.u32 %s1, 4
          %s159 = int_to_ptr.vmem [resolvable:$true] %s158
          %161 = dma.vmem_to_smem %s159, 16, [#allocation7], [#allocation6]
        $region20: #{tpu_custom_call.1} parent=11 // pred_fallthru
          _
      $region12: #{tpu_custom_call.1} parent=5 // pred_fallthru
        _
      %p162 = scmp.lt.s32.totalorder %s17, 4
      // Predicated region
      $region21: #{tpu_custom_call.1} parent=5 // pred_check
        %p163 = pneg %p162
      $region22: #{tpu_custom_call.1} parent=5 // pred_check_branch
        %165 = sbr.rel (%p163) target = $region24
      $region23: #{tpu_custom_call.1} parent=5 // pred_region
        // Predicated region
        $region25: #{tpu_custom_call.1} parent=23 // pred_check
          %p166 = pneg %p93
        $region26: #{tpu_custom_call.1} parent=23 // pred_check_branch
          %168 = sbr.rel (%p166) target = $region28
        $region27: #{tpu_custom_call.1} parent=23 // pred_region
          #allocation11 [shape = 'u32[6]{0}', space=smem, size = 0x18, scoped, tag = 'DMA stride descriptor']
          %s169 = sand.u32 %s83, 1
          %s170 = scalar_lea.sflag [#allocation3], %s169
          %s171 = sand.u32 %s83, 1
          %s172 = smul.addr %s171, 48
          %s173 = scalar_lea.vmem [#allocation8], %s172
          %s174 = smul.u32 2, %s25
          %s176 = ssub.s32 768, 768
          %177 = vsyncadd %s170, %s176
          %s178 = smul.addr %s24, 12
          %s179 = sadd.s32 %s174, %s178
          %s180 = smul.addr %s179, 128
          %s181 = scalar_lea.hbm %s2, %s180
          %s183 = sshll.u32 1, 14
          %s184 = sxor.u32 4294967295, %s183
          %s186 = sld [smem:[#allocation0]]
          %s187 = sadd.s32 2, %s186
          %s189 = sshll.u32 7, 26
          %s190 = sxor.u32 4294967295, %s189
          %s191 = sand.u32 0, %s190
          %s192 = sshll.u32 %s187, 26
          %s193 = sor.u32 %s191, %s192
          %s194 = sshll.u32 %s173, 4
          %s195 = int_to_ptr.vmem [resolvable:$true] %s194
          %201 = sst [smem:[#allocation11]] 512
          %s202 = scalar_lea.smem [#allocation11], 1
          %203 = sst [smem:[%s202]] 256
          %s204 = scalar_lea.smem [#allocation11], 2
          %205 = sst [smem:[%s204]] 2
          %s206 = scalar_lea.smem [#allocation11], 3
          %207 = sst [smem:[%s206]] 128
          %s208 = scalar_lea.smem [#allocation11], 4
          %209 = sst [smem:[%s208]] 128
          %s210 = scalar_lea.smem [#allocation11], 5
          %211 = sst [smem:[%s210]] 8
          %213 = dma.general %s181, 768, %s195, %s170, [#allocation10], [#allocation11], %s193, 0
        $region28: #{tpu_custom_call.1} parent=23 // pred_fallthru
          _
      $region24: #{tpu_custom_call.1} parent=5 // pred_fallthru
        _
      %p214 = scmp.le.s32.totalorder 1, %s17
      %p215 = scmp.lt.s32.totalorder %s17, 5
      %p216 = pnand %p214, %p215
      %p217 = pneg %p216
      // Predicated region
      $region29: #{tpu_custom_call.1} parent=5 // pred_check
        _
      $region30: #{tpu_custom_call.1} parent=5 // pred_check_branch
        %219 = sbr.rel (%p216) target = $region32
      $region31: #{tpu_custom_call.1} parent=5 // pred_region
        %s220 = ssub.s32 %s17, 1
        // Predicated region
        $region33: #{tpu_custom_call.1} parent=31 // pred_check
          %p221 = pneg %p50
        $region34: #{tpu_custom_call.1} parent=31 // pred_check_branch
          %223 = sbr.rel (%p221) target = $region36
        $region35: #{tpu_custom_call.1} parent=31 // pred_region
          %224 = dma.done [#allocation5], 16
        $region36: #{tpu_custom_call.1} parent=31 // pred_fallthru
          _
        // Predicated region
        $region37: #{tpu_custom_call.1} parent=31 // pred_check
          %p225 = pneg %p71
        $region38: #{tpu_custom_call.1} parent=31 // pred_check_branch
          %227 = sbr.rel (%p225) target = $region40
        $region39: #{tpu_custom_call.1} parent=31 // pred_region
          %228 = dma.done [#allocation6], 16
        $region40: #{tpu_custom_call.1} parent=31 // pred_fallthru
          _
        %s229 = sand.u32 %s86, 1
        %s230 = scalar_lea.sflag [#allocation3], %s229
        %s231 = sand.u32 %s86, 1
        %s232 = smul.addr %s231, 48
        %s233 = scalar_lea.vmem [#allocation8], %s232
        // Predicated region
        $region41: #{tpu_custom_call.1} parent=31 // pred_check
          %p234 = pneg %p99
        $region42: #{tpu_custom_call.1} parent=31 // pred_check_branch
          %236 = sbr.rel (%p234) target = $region44
        $region43: #{tpu_custom_call.1} parent=31 // pred_region
          %237 = dma.done %s230, 768
        $region44: #{tpu_custom_call.1} parent=31 // pred_fallthru
          _
        %238 = sfence
        %p239 = pneg %p50
        %p240 = pneg %p47
        %p241 = pneg %p71
        %p242 = pneg %p68
        %s243 = sand.u32 %s86, 1
        %s244 = scalar_lea.sflag [#allocation3], %s243
        %s245 = sand.u32 %s86, 1
        %s246 = smul.addr %s245, 48
        %s247 = scalar_lea.vmem [#allocation8], %s246
        %p248 = pneg %p99
        %p249 = pneg %p96
        %p250 = pneg %p127
        %p251 = pneg %p124
        %s252 = sand.u32 %s114, 1
        %s253 = scalar_lea.sflag [#allocation4], %s252
        %s254 = sand.u32 %s114, 1
        %s255 = smul.addr %s254, 48
        %s256 = scalar_lea.vmem [#allocation9], %s255
        %s257 = smul.u32 2, %s27
        %s258 = smul.u32 2, %s27
        %v259 = vld [vmem:[%s233] sm:$0xff]
        %v260 = vld [vmem:[%s233 + $0x8] sm:$0xff]
        %s261 = sld [smem:[#allocation2]]
        %v262 = vstv %s261
        %v263 = vsub.f32 %v259, %v262
        %v264 = vsub.f32 %v260, %v262
        %s265 = sld [smem:[#allocation7]]
        %v266 = vstv %s265
        %v267 = vmul.f32 %v263, %v266
        %v268 = vmul.f32 %v264, %v266
        %vm269 = vcmask 261120
        %270 = vst.msk [vmem:[%s256] sm:$0xff] %vm269, %v267
        %271 = vst.msk [vmem:[%s256 + $0x8] sm:$0xff] %vm269, %v268
        %s272 = scalar_lea.vmem %s233, 16 [#allocation8]
        %v273 = vld [vmem:[%s272] sm:$0xff]
        %v274 = vld [vmem:[%s272 + $0x8] sm:$0xff]
        %s275 = sld [smem:[#allocation2 + $0x1]]
        %v276 = vstv %s275
        %v277 = vsub.f32 %v273, %v276
        %v278 = vsub.f32 %v274, %v276
        %s279 = sld [smem:[#allocation7 + $0x1]]
        %v280 = vstv %s279
        %v281 = vmul.f32 %v277, %v280
        %v282 = vmul.f32 %v278, %v280
        %s283 = scalar_lea.vmem %s256, 16 [#allocation9]
        %284 = vst.msk [vmem:[%s283] sm:$0xff] %vm269, %v281
        %285 = vst.msk [vmem:[%s283 + $0x8] sm:$0xff] %vm269, %v282
        %s286 = scalar_lea.vmem %s233, 32 [#allocation8]
        %v287 = vld [vmem:[%s286] sm:$0xff]
        %v288 = vld [vmem:[%s286 + $0x8] sm:$0xff]
        %s289 = sld [smem:[#allocation2 + $0x2]]
        %v290 = vstv %s289
        %v291 = vsub.f32 %v287, %v290
        %v292 = vsub.f32 %v288, %v290
        %s293 = sld [smem:[#allocation7 + $0x2]]
        %v294 = vstv %s293
        %v295 = vmul.f32 %v291, %v294
        %v296 = vmul.f32 %v292, %v294
        %s297 = scalar_lea.vmem %s256, 32 [#allocation9]
        %298 = vst.msk [vmem:[%s297] sm:$0xff] %vm269, %v295
        %299 = vst.msk [vmem:[%s297 + $0x8] sm:$0xff] %vm269, %v296
        %s300 = sand.u32 %s114, 1
        %s301 = scalar_lea.sflag [#allocation4], %s300
        %s302 = sand.u32 %s114, 1
        %s303 = smul.addr %s302, 48
        %s304 = scalar_lea.vmem [#allocation9], %s303
        // Predicated region
        $region45: #{tpu_custom_call.1} parent=31 // pred_check
          %p305 = pneg %p124
        $region46: #{tpu_custom_call.1} parent=31 // pred_check_branch
          %307 = sbr.rel (%p305) target = $region48
        $region47: #{tpu_custom_call.1} parent=31 // pred_region
          #allocation13 [shape = 'u32[6]{0}', space=smem, size = 0x18, scoped, tag = 'DMA stride descriptor']
          %s308 = smul.u32 2, %s27
          %s310 = ssub.s32 768, 768
          %311 = vsyncadd %s301, %s310
          %s312 = smul.addr %s26, 12
          %s313 = sadd.s32 %s308, %s312
          %s314 = smul.addr %s313, 128
          %s315 = scalar_lea.hbm %s3, %s314
          %s317 = sshll.u32 1, 14
          %s318 = sxor.u32 4294967295, %s317
          %s321 = sshll.u32 7, 18
          %s322 = sxor.u32 4294967295, %s321
          %s323 = sand.u32 0, %s322
          %s325 = sor.u32 %s323, 0
          %s327 = sshll.u32 3, 24
          %s328 = sxor.u32 4294967295, %s327
          %s329 = sand.u32 %s325, %s328
          %s331 = sor.u32 %s329, 0
          %s332 = sshll.u32 %s304, 4
          %s333 = int_to_ptr.vmem [resolvable:$true] %s332
          %339 = sst [smem:[#allocation13]] 256
          %s340 = scalar_lea.smem [#allocation13], 1
          %341 = sst [smem:[%s340]] 512
          %s342 = scalar_lea.smem [#allocation13], 2
          %343 = sst [smem:[%s342]] 2
          %s344 = scalar_lea.smem [#allocation13], 3
          %345 = sst [smem:[%s344]] 128
          %s346 = scalar_lea.smem [#allocation13], 4
          %347 = sst [smem:[%s346]] 128
          %s348 = scalar_lea.smem [#allocation13], 5
          %349 = sst [smem:[%s348]] 8
          %351 = dma.general %s333, 768, %s315, %s301, [#allocation12], [#allocation13], %s331, 0
        $region48: #{tpu_custom_call.1} parent=31 // pred_fallthru
          _
      $region32: #{tpu_custom_call.1} parent=5 // pred_fallthru
        _
      %p352 = scmp.le.s32.totalorder 2, %s17
      // Predicated region
      $region49: #{tpu_custom_call.1} parent=5 // pred_check
        %p353 = pneg %p352
      $region50: #{tpu_custom_call.1} parent=5 // pred_check_branch
        %355 = sbr.rel (%p353) target = $region52
      $region51: #{tpu_custom_call.1} parent=5 // pred_region
        %s356 = ssub.s32 %s17, 2
        // Predicated region
        $region53: #{tpu_custom_call.1} parent=51 // pred_check
          %p357 = pneg %p130
        $region54: #{tpu_custom_call.1} parent=51 // pred_check_branch
          %359 = sbr.rel (%p357) target = $region56
        $region55: #{tpu_custom_call.1} parent=51 // pred_region
          %s360 = sand.u32 %s115, 1
          %s361 = scalar_lea.sflag [#allocation4], %s360
          %s362 = sand.u32 %s115, 1
          %s363 = smul.addr %s362, 48
          %s364 = scalar_lea.vmem [#allocation9], %s363
          %365 = dma.done %s361, 768
        $region56: #{tpu_custom_call.1} parent=51 // pred_fallthru
          _
      $region52: #{tpu_custom_call.1} parent=5 // pred_fallthru
        _
    $region6: #{tpu_custom_call.1} parent=1 // loop_footer
      %s21 = sadd.s32 1, %s17
    $region7: #{tpu_custom_call.1} parent=1 // loop_footer_branch
      %16 = sbr.rel target = $region3
    $region8: #{tpu_custom_call.1} parent=1 // loop_exit
      _
    %366 = vsyncpa [#allocation3], 1
    %s367 = scalar_lea.sflag [#allocation3], 1
    %368 = vsyncpa %s367, 1
    %369 = vsyncpa [#allocation4], 1
    %s370 = scalar_lea.sflag [#allocation4], 1
    %371 = vsyncpa %s370, 1
    %372 = vsyncpa [#allocation5], 1
    %s373 = scalar_lea.sflag [#allocation5], 1
    %374 = vsyncpa %s373, 1
    %375 = vsyncpa [#allocation6], 1
    %s376 = scalar_lea.sflag [#allocation6], 1
    %377 = vsyncpa %s376, 1

</llo_original>
